<compile_context>
chip_gen: v7x
topology: tpu7x:2x2x1
jax: 0.10.0
libtpu: 0.0.40
codegen_flags: <defaults>
</compile_context>

<pallas_src>
import functools

import jax
import jax.numpy as jnp
from jax.experimental import pallas as pl
from jax.experimental.pallas import tpu as pltpu


def _round_up(x: int, m: int) -> int:
    return (x + m - 1) // m * m


def _fused_mlp_kernel(*refs, num_layers: int):
    """Fused forward of the whole MLP on one (tm, P) activation tile.

    refs = (x_ref, w0, b0, w1, b1, ..., w{L-1}, b{L-1}, o_ref)
    All weights are pre-transposed to (in_pad, out_pad); biases are (1, out_pad).
    """
    x_ref = refs[0]
    o_ref = refs[-1]
    wb = refs[1:-1]

    h = x_ref[...]                                        # (tm, P) f32, padded lanes == 0
    for i in range(num_layers):                           # small static unroll
        w = wb[2 * i][...]                                # (P, P)
        b = wb[2 * i + 1][...]                            # (1, P)
        y = jnp.dot(h, w, preferred_element_type=jnp.float32) + b
        if i < num_layers - 1:
            # SiLU(y) = y * sigmoid(y) = y / (1 + exp(-y)); exp + recip go to EUP.
            e = jnp.exp(-y)
            y = y * pl.reciprocal(1.0 + e, approx=True)
        h = y
    o_ref[...] = h


def init_pinnkan_params(key, network):
    """Xavier-normal weights, zero biases — mirrors xavier_initialization."""
    params = []
    for i in range(len(network) - 1):
        in_f, out_f = network[i], network[i + 1]
        key, sub = jax.random.split(key)
        std = (2.0 / (in_f + out_f)) ** 0.5
        w = std * jax.random.normal(sub, (out_f, in_f), dtype=jnp.float32)  # (out, in) torch layout
        b = jnp.zeros((out_f,), dtype=jnp.float32)
        params.append((w, b))
    return params


def pinnkan_forward(x, params, *, tm: int = 2048):
    """Full PINNKAN forward pass with a single fused Pallas kernel.

    x: (N, in_f) float32; params: list of (W (out,in), b (out,)) torch-layout.
    """
    n, in_f = x.shape
    num_layers = len(params)
    out_f_last = params[-1][0].shape[0]

    # Pad every feature dim to one common lane-dense width.
    dims = [in_f] + [w.shape[0] for (w, _) in params]
    P = _round_up(max(dims), 128)

    # Pre-transpose + zero-pad parameters once (plain JAX, outside the kernel).
    wb_padded = []
    for (w, b) in params:
        out_f, k_f = w.shape
        wt = jnp.zeros((P, P), jnp.float32).at[:k_f, :out_f].set(w.T)
        bp = jnp.zeros((1, P), jnp.float32).at[:, :out_f].set(b.reshape(1, -1))
        wb_padded += [wt, bp]

    # Batch tiling: large tiles amortize per-step overhead; pad the tail with
    # zero rows instead of masking, slice them off at the end.
    # (tm is capped low enough to stay well inside v7x's 64 MiB VMEM even with
    #  double-buffered in/out tiles at P=128.)
    tm = int(min(max(tm, 8), 8192))
    tm = min(tm, _round_up(n, 8))
    tm = _round_up(tm, 8)
    n_pad = _round_up(n, tm)

    x_pad = jnp.zeros((n_pad, P), jnp.float32).at[:n, :in_f].set(x)

    grid = (n_pad // tm,)
    out = pl.pallas_call(
        functools.partial(_fused_mlp_kernel, num_layers=num_layers),
        out_shape=jax.ShapeDtypeStruct((n_pad, P), jnp.float32),
        grid=grid,
        in_specs=[pl.BlockSpec((tm, P), lambda i: (i, 0))]
        + [
            pl.BlockSpec((P, P), lambda i: (0, 0)),   # weight: resident across grid
            pl.BlockSpec((1, P), lambda i: (0, 0)),   # bias:   resident across grid
        ]
        * num_layers,
        out_specs=pl.BlockSpec((tm, P), lambda i: (i, 0)),
        compiler_params=pltpu.CompilerParams(
            dimension_semantics=("parallel",),
        ),
    )(x_pad, *wb_padded)

    return out[:n, :out_f_last]


def _reference_forward(x, params):
    n_layers = len(params)
    for idx, (w, b) in enumerate(params):
        x = x @ w.T + b.reshape(1, -1)
        if idx < n_layers - 1:
            x = x * jax.nn.sigmoid(x)
    return x


if __name__ == "__main__":
    key = jax.random.PRNGKey(0)

    # Typical PINN setup: 2-D coordinates in, scalar field out.
    network = [2, 32, 32, 32, 1]
    batch = 128

    k_in, k_params = jax.random.split(key)
    x = jax.random.uniform(k_in, (batch, network[0]), dtype=jnp.float32)
    params = init_pinnkan_params(k_params, network)

    out = pinnkan_forward(x, params)
    out = jax.block_until_ready(out)

    ref = _reference_forward(x, params)
    assert out.shape == (batch, network[-1])
    # approx reciprocal in the SiLU epilogue -> slightly looser tolerance
    assert jnp.allclose(out, ref, atol=2e-3, rtol=2e-3), "mismatch vs reference"

    print("KERNEL_OK")
</pallas_src>

<mosaic_0001>
module attributes {stable_mosaic.version = 11 : i64} {
  func.func @_fused_mlp_kernel(%arg0: i32, %arg1: memref<128x128xf32, #tpu.memory_space<vmem>>, %arg2: memref<128x128xf32, #tpu.memory_space<vmem>>, %arg3: memref<1x128xf32, #tpu.memory_space<vmem>>, %arg4: memref<128x128xf32, #tpu.memory_space<vmem>>, %arg5: memref<1x128xf32, #tpu.memory_space<vmem>>, %arg6: memref<128x128xf32, #tpu.memory_space<vmem>>, %arg7: memref<1x128xf32, #tpu.memory_space<vmem>>, %arg8: memref<128x128xf32, #tpu.memory_space<vmem>>, %arg9: memref<1x128xf32, #tpu.memory_space<vmem>>, %arg10: memref<128x128xf32, #tpu.memory_space<vmem>>) attributes {dimension_semantics = [#tpu.dimension_semantics<parallel>], iteration_bounds = array<i64: 1>, scalar_prefetch = 0 : i64, scratch_operands = 0 : i64, tpu.core_type = #tpu.core_type<tc>, window_params = [{transform_indices = @transform_0, window_bounds = array<i64: 128, 128>}, {pipeline_mode = #tpu.pipeline_mode<synchronous>, transform_indices = @transform_1, window_bounds = array<i64: 128, 128>}, {pipeline_mode = #tpu.pipeline_mode<synchronous>, transform_indices = @transform_2, window_bounds = array<i64: 1, 128>}, {pipeline_mode = #tpu.pipeline_mode<synchronous>, transform_indices = @transform_3, window_bounds = array<i64: 128, 128>}, {pipeline_mode = #tpu.pipeline_mode<synchronous>, transform_indices = @transform_4, window_bounds = array<i64: 1, 128>}, {pipeline_mode = #tpu.pipeline_mode<synchronous>, transform_indices = @transform_5, window_bounds = array<i64: 128, 128>}, {pipeline_mode = #tpu.pipeline_mode<synchronous>, transform_indices = @transform_6, window_bounds = array<i64: 1, 128>}, {pipeline_mode = #tpu.pipeline_mode<synchronous>, transform_indices = @transform_7, window_bounds = array<i64: 128, 128>}, {pipeline_mode = #tpu.pipeline_mode<synchronous>, transform_indices = @transform_8, window_bounds = array<i64: 1, 128>}, {transform_indices = @transform_9, window_bounds = array<i64: 128, 128>}]} {
    %c0 = arith.constant 0 : index
    %c0_0 = arith.constant 0 : index
    %0 = vector.load %arg1[%c0, %c0_0] : memref<128x128xf32, #tpu.memory_space<vmem>>, vector<128x128xf32>
    %c0_1 = arith.constant 0 : index
    %c0_2 = arith.constant 0 : index
    %1 = vector.load %arg2[%c0_1, %c0_2] : memref<128x128xf32, #tpu.memory_space<vmem>>, vector<128x128xf32>
    %c0_3 = arith.constant 0 : index
    %c0_4 = arith.constant 0 : index
    %2 = vector.load %arg3[%c0_3, %c0_4] : memref<1x128xf32, #tpu.memory_space<vmem>>, vector<1x128xf32>
    %cst = arith.constant dense<0.000000e+00> : vector<128x128xf32>
    %3 = tpu.matmul %0, %1, %cst {dimension_numbers = #tpu.dot_dimension_numbers<[1], [0], [0], [1], [0, 0, 1, 1], [], []>} : vector<128x128xf32>, vector<128x128xf32>, vector<128x128xf32> -> vector<128x128xf32>
    %4 = vector.broadcast %2 : vector<1x128xf32> to vector<128x128xf32>
    %5 = arith.addf %3, %4 : vector<128x128xf32>
    %cst_5 = arith.constant 0.000000e+00 : f32
    %6 = vector.broadcast %cst_5 : f32 to vector<128x128xf32>
    %7 = arith.subf %6, %5 : vector<128x128xf32>
    %8 = math.exp %7 : vector<128x128xf32>
    %cst_6 = arith.constant 1.000000e+00 : f32
    %9 = vector.broadcast %cst_6 : f32 to vector<128x128xf32>
    %10 = arith.addf %9, %8 : vector<128x128xf32>
    %11 = tpu.reciprocal %10 {approx = true} : vector<128x128xf32> -> vector<128x128xf32>
    %12 = arith.mulf %5, %11 : vector<128x128xf32>
    %c0_7 = arith.constant 0 : index
    %c0_8 = arith.constant 0 : index
    %13 = vector.load %arg4[%c0_7, %c0_8] : memref<128x128xf32, #tpu.memory_space<vmem>>, vector<128x128xf32>
    %c0_9 = arith.constant 0 : index
    %c0_10 = arith.constant 0 : index
    %14 = vector.load %arg5[%c0_9, %c0_10] : memref<1x128xf32, #tpu.memory_space<vmem>>, vector<1x128xf32>
    %cst_11 = arith.constant dense<0.000000e+00> : vector<128x128xf32>
    %15 = tpu.matmul %12, %13, %cst_11 {dimension_numbers = #tpu.dot_dimension_numbers<[1], [0], [0], [1], [0, 0, 1, 1], [], []>} : vector<128x128xf32>, vector<128x128xf32>, vector<128x128xf32> -> vector<128x128xf32>
    %16 = vector.broadcast %14 : vector<1x128xf32> to vector<128x128xf32>
    %17 = arith.addf %15, %16 : vector<128x128xf32>
    %cst_12 = arith.constant 0.000000e+00 : f32
    %18 = vector.broadcast %cst_12 : f32 to vector<128x128xf32>
    %19 = arith.subf %18, %17 : vector<128x128xf32>
    %20 = math.exp %19 : vector<128x128xf32>
    %cst_13 = arith.constant 1.000000e+00 : f32
    %21 = vector.broadcast %cst_13 : f32 to vector<128x128xf32>
    %22 = arith.addf %21, %20 : vector<128x128xf32>
    %23 = tpu.reciprocal %22 {approx = true} : vector<128x128xf32> -> vector<128x128xf32>
    %24 = arith.mulf %17, %23 : vector<128x128xf32>
    %c0_14 = arith.constant 0 : index
    %c0_15 = arith.constant 0 : index
    %25 = vector.load %arg6[%c0_14, %c0_15] : memref<128x128xf32, #tpu.memory_space<vmem>>, vector<128x128xf32>
    %c0_16 = arith.constant 0 : index
    %c0_17 = arith.constant 0 : index
    %26 = vector.load %arg7[%c0_16, %c0_17] : memref<1x128xf32, #tpu.memory_space<vmem>>, vector<1x128xf32>
    %cst_18 = arith.constant dense<0.000000e+00> : vector<128x128xf32>
    %27 = tpu.matmul %24, %25, %cst_18 {dimension_numbers = #tpu.dot_dimension_numbers<[1], [0], [0], [1], [0, 0, 1, 1], [], []>} : vector<128x128xf32>, vector<128x128xf32>, vector<128x128xf32> -> vector<128x128xf32>
    %28 = vector.broadcast %26 : vector<1x128xf32> to vector<128x128xf32>
    %29 = arith.addf %27, %28 : vector<128x128xf32>
    %cst_19 = arith.constant 0.000000e+00 : f32
    %30 = vector.broadcast %cst_19 : f32 to vector<128x128xf32>
    %31 = arith.subf %30, %29 : vector<128x128xf32>
    %32 = math.exp %31 : vector<128x128xf32>
    %cst_20 = arith.constant 1.000000e+00 : f32
    %33 = vector.broadcast %cst_20 : f32 to vector<128x128xf32>
    %34 = arith.addf %33, %32 : vector<128x128xf32>
    %35 = tpu.reciprocal %34 {approx = true} : vector<128x128xf32> -> vector<128x128xf32>
    %36 = arith.mulf %29, %35 : vector<128x128xf32>
    %c0_21 = arith.constant 0 : index
    %c0_22 = arith.constant 0 : index
    %37 = vector.load %arg8[%c0_21, %c0_22] : memref<128x128xf32, #tpu.memory_space<vmem>>, vector<128x128xf32>
    %c0_23 = arith.constant 0 : index
    %c0_24 = arith.constant 0 : index
    %38 = vector.load %arg9[%c0_23, %c0_24] : memref<1x128xf32, #tpu.memory_space<vmem>>, vector<1x128xf32>
    %cst_25 = arith.constant dense<0.000000e+00> : vector<128x128xf32>
    %39 = tpu.matmul %36, %37, %cst_25 {dimension_numbers = #tpu.dot_dimension_numbers<[1], [0], [0], [1], [0, 0, 1, 1], [], []>} : vector<128x128xf32>, vector<128x128xf32>, vector<128x128xf32> -> vector<128x128xf32>
    %40 = vector.broadcast %38 : vector<1x128xf32> to vector<128x128xf32>
    %41 = arith.addf %39, %40 : vector<128x128xf32>
    %c0_26 = arith.constant 0 : index
    %c0_27 = arith.constant 0 : index
    %42 = vector.load %arg10[%c0_26, %c0_27] : memref<128x128xf32, #tpu.memory_space<vmem>>, vector<128x128xf32>
    tpu.vector_store %arg10[%c0_26, %c0_27], %41 {strides = array<i32>} : memref<128x128xf32, #tpu.memory_space<vmem>>, vector<128x128xf32>,
    return
  }
  func.func @transform_0(%arg0: i32) -> (i32, i32) {
    %c0_i32 = arith.constant 0 : i32
    %c0_i32_0 = arith.constant 0 : i32
    return %arg0, %c0_i32 : i32, i32
  }
  func.func @transform_1(%arg0: i32) -> (i32, i32) {
    %c0_i32 = arith.constant 0 : i32
    %c0_i32_0 = arith.constant 0 : i32
    %c0_i32_1 = arith.constant 0 : i32
    return %c0_i32, %c0_i32_0 : i32, i32
  }
  func.func @transform_2(%arg0: i32) -> (i32, i32) {
    %c0_i32 = arith.constant 0 : i32
    %c0_i32_0 = arith.constant 0 : i32
    %c0_i32_1 = arith.constant 0 : i32
    return %c0_i32, %c0_i32_0 : i32, i32
  }
  func.func @transform_3(%arg0: i32) -> (i32, i32) {
    %c0_i32 = arith.constant 0 : i32
    %c0_i32_0 = arith.constant 0 : i32
    %c0_i32_1 = arith.constant 0 : i32
    return %c0_i32, %c0_i32_0 : i32, i32
  }
  func.func @transform_4(%arg0: i32) -> (i32, i32) {
    %c0_i32 = arith.constant 0 : i32
    %c0_i32_0 = arith.constant 0 : i32
    %c0_i32_1 = arith.constant 0 : i32
    return %c0_i32, %c0_i32_0 : i32, i32
  }
  func.func @transform_5(%arg0: i32) -> (i32, i32) {
    %c0_i32 = arith.constant 0 : i32
    %c0_i32_0 = arith.constant 0 : i32
    %c0_i32_1 = arith.constant 0 : i32
    return %c0_i32, %c0_i32_0 : i32, i32
  }
  func.func @transform_6(%arg0: i32) -> (i32, i32) {
    %c0_i32 = arith.constant 0 : i32
    %c0_i32_0 = arith.constant 0 : i32
    %c0_i32_1 = arith.constant 0 : i32
    return %c0_i32, %c0_i32_0 : i32, i32
  }
  func.func @transform_7(%arg0: i32) -> (i32, i32) {
    %c0_i32 = arith.constant 0 : i32
    %c0_i32_0 = arith.constant 0 : i32
    %c0_i32_1 = arith.constant 0 : i32
    return %c0_i32, %c0_i32_0 : i32, i32
  }
  func.func @transform_8(%arg0: i32) -> (i32, i32) {
    %c0_i32 = arith.constant 0 : i32
    %c0_i32_0 = arith.constant 0 : i32
    %c0_i32_1 = arith.constant 0 : i32
    return %c0_i32, %c0_i32_0 : i32, i32
  }
  func.func @transform_9(%arg0: i32) -> (i32, i32) {
    %c0_i32 = arith.constant 0 : i32
    %c0_i32_0 = arith.constant 0 : i32
    return %arg0, %c0_i32 : i32, i32
  }
}

</mosaic_0001>

<llo_original>
// kernel: tpu_custom_call.1
$region0: #{tpu_custom_call.1}
  #allocation0 [shape = 'u32[]', space=smem, size = 0x4, offset = 0x4, fixed_abs, tag = 'smem constant byte address 0x4 - core index']
  #allocation1 [shape = 'u32[144,128]{1,0:T(1,128)}', space=vmem, size = 0x12000, scoped, tag = 'internal scratch']
  %s0 = inlined_call_operand.hbm [shape: f32[128,128], index: 0, kind: input, shape index: {}]
  %s1 = inlined_call_operand.hbm [shape: f32[128,128], index: 1, kind: input, shape index: {}]
  %s2 = inlined_call_operand.vmem [shape: f32[1,128], index: 2, kind: input, shape index: {}]
  %s3 = inlined_call_operand.hbm [shape: f32[128,128], index: 3, kind: input, shape index: {}]
  %s4 = inlined_call_operand.vmem [shape: f32[1,128], index: 4, kind: input, shape index: {}]
  %s5 = inlined_call_operand.hbm [shape: f32[128,128], index: 5, kind: input, shape index: {}]
  %s6 = inlined_call_operand.vmem [shape: f32[1,128], index: 6, kind: input, shape index: {}]
  %s7 = inlined_call_operand.hbm [shape: f32[128,128], index: 7, kind: input, shape index: {}]
  %s8 = inlined_call_operand.vmem [shape: f32[1,128], index: 8, kind: input, shape index: {}]
  %s9 = inlined_call_operand.hbm [shape: f32[128,128], index: 9, kind: output, shape index: {}]
  %s10 = sld [smem:[#allocation0]]
  $region66: #{tpu_custom_call.1} parent=0
    _
  %s12 = ssub.s32 1, %s10
  %s13 = scalar_select 0, %s12, %s10
  $region1: #{tpu_custom_call.1} parent=0
    #allocation2 [shape = 'u8[65536]{0}', space=vmem, size = 0x10000, scoped, tag = 'input window, operand 0, single buffered']
    #allocation3 [shape = 's32[1]{0}', space=sflag, size = 0x4, scoped, tag = 'scoped memory for tpu_custom_call.1']
    #allocation4 [shape = 's32[1]{0}', space=sflag, size = 0x4, scoped, tag = 'scoped memory for tpu_custom_call.1']
    #allocation5 [shape = 'u8[65536]{0}', space=vmem, size = 0x10000, scoped, tag = 'input window, operand 1, single buffered']
    #allocation6 [shape = 's32[1]{0}', space=sflag, size = 0x4, scoped, tag = 'scoped memory for tpu_custom_call.1']
    #allocation7 [shape = 'u8[65536]{0}', space=vmem, size = 0x10000, scoped, tag = 'input window, operand 3, single buffered']
    #allocation8 [shape = 'u8[65536]{0}', space=vmem, size = 0x10000, scoped, tag = 'input window, operand 5, single buffered']
    #allocation9 [shape = 's32[1]{0}', space=sflag, size = 0x4, scoped, tag = 'scoped memory for tpu_custom_call.1']
    #allocation10 [shape = 'u8[65536]{0}', space=vmem, size = 0x10000, scoped, tag = 'input window, operand 7, single buffered']
    #allocation11 [shape = 'u8[65536]{0}', space=vmem, size = 0x10000, scoped, tag = 'output window, operand 0, single buffered']
    %14 = vsyncpa [#allocation3], 0
    %15 = vsyncpa [#allocation6], 0
    %16 = vsyncpa [#allocation9], 0
    %17 = vsyncpa [#allocation4], 0
    // Predicated region
    $region2: #{tpu_custom_call.1} parent=1 // pred_check
      _
    $region3: #{tpu_custom_call.1} parent=1 // pred_check_branch
      %19 = sbr.rel (0) target = $region5
    $region4: #{tpu_custom_call.1} parent=1 // pred_region
      %s21 = ssub.s32 2048, 2048
      %22 = vsyncadd [#allocation3], %s21
      %s23 = sshll.u32 [#allocation2], 4
      %s24 = int_to_ptr.vmem [resolvable:$true] %s23
      %29 = dma.hbm_to_vmem [thread:$0]  %s0, 2048, %s24, [#allocation3], 128, 128, 8
    $region5: #{tpu_custom_call.1} parent=1 // pred_fallthru
      _
    // Predicated region
    $region6: #{tpu_custom_call.1} parent=1 // pred_check
      _
    $region7: #{tpu_custom_call.1} parent=1 // pred_check_branch
      %31 = sbr.rel (0) target = $region9
    $region8: #{tpu_custom_call.1} parent=1 // pred_region
      %s33 = ssub.s32 2048, 2048
      %34 = vsyncadd [#allocation6], %s33
      %s35 = sshll.u32 [#allocation5], 4
      %s36 = int_to_ptr.vmem [resolvable:$true] %s35
      %41 = dma.hbm_to_vmem [thread:$0]  %s1, 2048, %s36, [#allocation6], 128, 128, 8
    $region9: #{tpu_custom_call.1} parent=1 // pred_fallthru
      _
    // Predicated region
    $region10: #{tpu_custom_call.1} parent=1 // pred_check
      _
    $region11: #{tpu_custom_call.1} parent=1 // pred_check_branch
      %43 = sbr.rel (0) target = $region13
    $region12: #{tpu_custom_call.1} parent=1 // pred_region
      _
    $region13: #{tpu_custom_call.1} parent=1 // pred_fallthru
      _
    // Predicated region
    $region14: #{tpu_custom_call.1} parent=1 // pred_check
      _
    $region15: #{tpu_custom_call.1} parent=1 // pred_check_branch
      %45 = sbr.rel (0) target = $region17
    $region16: #{tpu_custom_call.1} parent=1 // pred_region
      %s47 = ssub.s32 2048, 2048
      %48 = vsyncadd [#allocation6], %s47
      %s49 = sshll.u32 [#allocation7], 4
      %s50 = int_to_ptr.vmem [resolvable:$true] %s49
      %55 = dma.hbm_to_vmem [thread:$0]  %s3, 2048, %s50, [#allocation6], 128, 128, 8
    $region17: #{tpu_custom_call.1} parent=1 // pred_fallthru
      _
    // Predicated region
    $region18: #{tpu_custom_call.1} parent=1 // pred_check
      _
    $region19: #{tpu_custom_call.1} parent=1 // pred_check_branch
      %57 = sbr.rel (0) target = $region21
    $region20: #{tpu_custom_call.1} parent=1 // pred_region
      _
    $region21: #{tpu_custom_call.1} parent=1 // pred_fallthru
      _
    // Predicated region
    $region22: #{tpu_custom_call.1} parent=1 // pred_check
      _
    $region23: #{tpu_custom_call.1} parent=1 // pred_check_branch
      %59 = sbr.rel (0) target = $region25
    $region24: #{tpu_custom_call.1} parent=1 // pred_region
      %s61 = ssub.s32 2048, 2048
      %62 = vsyncadd [#allocation9], %s61
      %s63 = sshll.u32 [#allocation8], 4
      %s64 = int_to_ptr.vmem [resolvable:$true] %s63
      %69 = dma.hbm_to_vmem [thread:$0]  %s5, 2048, %s64, [#allocation9], 128, 128, 8
    $region25: #{tpu_custom_call.1} parent=1 // pred_fallthru
      _
    // Predicated region
    $region26: #{tpu_custom_call.1} parent=1 // pred_check
      _
    $region27: #{tpu_custom_call.1} parent=1 // pred_check_branch
      %71 = sbr.rel (0) target = $region29
    $region28: #{tpu_custom_call.1} parent=1 // pred_region
      _
    $region29: #{tpu_custom_call.1} parent=1 // pred_fallthru
      _
    // Predicated region
    $region30: #{tpu_custom_call.1} parent=1 // pred_check
      _
    $region31: #{tpu_custom_call.1} parent=1 // pred_check_branch
      %73 = sbr.rel (0) target = $region33
    $region32: #{tpu_custom_call.1} parent=1 // pred_region
      %s75 = ssub.s32 2048, 2048
      %76 = vsyncadd [#allocation9], %s75
      %s77 = sshll.u32 [#allocation10], 4
      %s78 = int_to_ptr.vmem [resolvable:$true] %s77
      %83 = dma.hbm_to_vmem [thread:$0]  %s7, 2048, %s78, [#allocation9], 128, 128, 8
    $region33: #{tpu_custom_call.1} parent=1 // pred_fallthru
      _
    // Predicated region
    $region34: #{tpu_custom_call.1} parent=1 // pred_check
      _
    $region35: #{tpu_custom_call.1} parent=1 // pred_check_branch
      %85 = sbr.rel (0) target = $region37
    $region36: #{tpu_custom_call.1} parent=1 // pred_region
      _
    $region37: #{tpu_custom_call.1} parent=1 // pred_fallthru
      _
    // Predicated region
    $region38: #{tpu_custom_call.1} parent=1 // pred_check
      _
    $region39: #{tpu_custom_call.1} parent=1 // pred_check_branch
      %87 = sbr.rel (0) target = $region41
    $region40: #{tpu_custom_call.1} parent=1 // pred_region
      %88 = dma.done [#allocation3], 2048
    $region41: #{tpu_custom_call.1} parent=1 // pred_fallthru
      _
    // Predicated region
    $region42: #{tpu_custom_call.1} parent=1 // pred_check
      _
    $region43: #{tpu_custom_call.1} parent=1 // pred_check_branch
      %90 = sbr.rel (0) target = $region45
    $region44: #{tpu_custom_call.1} parent=1 // pred_region
      %91 = dma.done [#allocation6], 2048
    $region45: #{tpu_custom_call.1} parent=1 // pred_fallthru
      _
    // Predicated region
    $region46: #{tpu_custom_call.1} parent=1 // pred_check
      _
    $region47: #{tpu_custom_call.1} parent=1 // pred_check_branch
      %93 = sbr.rel (0) target = $region49
    $region48: #{tpu_custom_call.1} parent=1 // pred_region
      %94 = dma.done [#allocation6], 2048
    $region49: #{tpu_custom_call.1} parent=1 // pred_fallthru
      _
    // Predicated region
    $region50: #{tpu_custom_call.1} parent=1 // pred_check
      _
    $region51: #{tpu_custom_call.1} parent=1 // pred_check_branch
      %96 = sbr.rel (0) target = $region53
    $region52: #{tpu_custom_call.1} parent=1 // pred_region
      %97 = dma.done [#allocation9], 2048
    $region53: #{tpu_custom_call.1} parent=1 // pred_fallthru
      _
    // Predicated region
    $region54: #{tpu_custom_call.1} parent=1 // pred_check
      _
    $region55: #{tpu_custom_call.1} parent=1 // pred_check_branch
      %99 = sbr.rel (0) target = $region57
    $region56: #{tpu_custom_call.1} parent=1 // pred_region
      %100 = dma.done [#allocation9], 2048
    $region57: #{tpu_custom_call.1} parent=1 // pred_fallthru
      _
    %v101 = vld [vmem:[#allocation2] sm:$0xff]
    %v102 = vld [vmem:[#allocation2 + $0x8] sm:$0xff]
    %v103 = vld [vmem:[#allocation2 + $0x10] sm:$0xff]
    %v104 = vld [vmem:[#allocation2 + $0x18] sm:$0xff]
    %v105 = vld [vmem:[#allocation2 + $0x20] sm:$0xff]
    %v106 = vld [vmem:[#allocation2 + $0x28] sm:$0xff]
    %v107 = vld [vmem:[#allocation2 + $0x30] sm:$0xff]
    %v108 = vld [vmem:[#allocation2 + $0x38] sm:$0xff]
    %v109 = vld [vmem:[#allocation2 + $0x40] sm:$0xff]
    %v110 = vld [vmem:[#allocation2 + $0x48] sm:$0xff]
    %v111 = vld [vmem:[#allocation2 + $0x50] sm:$0xff]
    %v112 = vld [vmem:[#allocation2 + $0x58] sm:$0xff]
    %v113 = vld [vmem:[#allocation2 + $0x60] sm:$0xff]
    %v114 = vld [vmem:[#allocation2 + $0x68] sm:$0xff]
    %v115 = vld [vmem:[#allocation2 + $0x70] sm:$0xff]
    %v116 = vld [vmem:[#allocation2 + $0x78] sm:$0xff]
    %v117 = vld [vmem:[#allocation5] sm:$0xff]
    %v118 = vld [vmem:[#allocation5 + $0x8] sm:$0xff]
    %v119 = vld [vmem:[#allocation5 + $0x10] sm:$0xff]
    %v120 = vld [vmem:[#allocation5 + $0x18] sm:$0xff]
    %v121 = vld [vmem:[#allocation5 + $0x20] sm:$0xff]
    %v122 = vld [vmem:[#allocation5 + $0x28] sm:$0xff]
    %v123 = vld [vmem:[#allocation5 + $0x30] sm:$0xff]
    %v124 = vld [vmem:[#allocation5 + $0x38] sm:$0xff]
    %v125 = vld [vmem:[#allocation5 + $0x40] sm:$0xff]
    %v126 = vld [vmem:[#allocation5 + $0x48] sm:$0xff]
    %v127 = vld [vmem:[#allocation5 + $0x50] sm:$0xff]
    %v128 = vld [vmem:[#allocation5 + $0x58] sm:$0xff]
    %v129 = vld [vmem:[#allocation5 + $0x60] sm:$0xff]
    %v130 = vld [vmem:[#allocation5 + $0x68] sm:$0xff]
    %v131 = vld [vmem:[#allocation5 + $0x70] sm:$0xff]
    %v132 = vld [vmem:[#allocation5 + $0x78] sm:$0xff]
    %v133 = vld [vmem:[%s2] sm:$0x1]
    %v135 = vlaneseq
    %v136 = vshrl.u32 %v135, 7
    %v137 = vsub.s32 0, %v136
    %v138 = vrot.slane %v133, %v137
    %140 = vmatprep.subr.mxu0 0.0
    %141 = vmatpush1.msra.mxu0 %v117
    %142 = vmatprep.subr.mxu0 0.0
    %143 = vmatpush1.msra.mxu0 %v118
    %144 = vmatprep.subr.mxu0 0.0
    %145 = vmatpush1.msra.mxu0 %v119
    %146 = vmatprep.subr.mxu0 0.0
    %147 = vmatpush1.msra.mxu0 %v120
    %148 = vmatprep.subr.mxu0 0.0
    %149 = vmatpush1.msra.mxu0 %v121
    %150 = vmatprep.subr.mxu0 0.0
    %151 = vmatpush1.msra.mxu0 %v122
    %152 = vmatprep.subr.mxu0 0.0
    %153 = vmatpush1.msra.mxu0 %v123
    %154 = vmatprep.subr.mxu0 0.0
    %155 = vmatpush1.msra.mxu0 %v124
    %156 = vmatprep.subr.mxu0 0.0
    %157 = vmatpush1.msra.mxu0 %v125
    %158 = vmatprep.subr.mxu0 0.0
    %159 = vmatpush1.msra.mxu0 %v126
    %160 = vmatprep.subr.mxu0 0.0
    %161 = vmatpush1.msra.mxu0 %v127
    %162 = vmatprep.subr.mxu0 0.0
    %163 = vmatpush1.msra.mxu0 %v128
    %164 = vmatprep.subr.mxu0 0.0
    %165 = vmatpush1.msra.mxu0 %v129
    %166 = vmatprep.subr.mxu0 0.0
    %167 = vmatpush1.msra.mxu0 %v130
    %168 = vmatprep.subr.mxu0 0.0
    %169 = vmatpush1.msra.mxu0 %v131
    %170 = vmatprep.subr.mxu0 0.0
    %171 = vmatpush1.msra.mxu0 %v132
    %172 = vmatprep.subr.mxu0 0.0
    %173 = vmatpush1.msra.mxu0 0.0
    %174 = vmatprep.subr.mxu0 0.0
    %175 = vmatpush1.msra.mxu0 0.0
    %176 = vmatprep.subr.mxu0 0.0
    %177 = vmatpush1.msra.mxu0 0.0
    %178 = vmatprep.subr.mxu0 0.0
    %179 = vmatpush1.msra.mxu0 0.0
    %180 = vmatprep.subr.mxu0 0.0
    %181 = vmatpush1.msra.mxu0 0.0
    %182 = vmatprep.subr.mxu0 0.0
    %183 = vmatpush1.msra.mxu0 0.0
    %184 = vmatprep.subr.mxu0 0.0
    %185 = vmatpush1.msra.mxu0 0.0
    %186 = vmatprep.subr.mxu0 0.0
    %187 = vmatpush1.msra.mxu0 0.0
    %188 = vmatprep.subr.mxu0 0.0
    %189 = vmatpush1.msra.mxu0 0.0
    %190 = vmatprep.subr.mxu0 0.0
    %191 = vmatpush1.msra.mxu0 0.0
    %192 = vmatprep.subr.mxu0 0.0
    %193 = vmatpush1.msra.mxu0 0.0
    %194 = vmatprep.subr.mxu0 0.0
    %195 = vmatpush1.msra.mxu0 0.0
    %196 = vmatprep.subr.mxu0 0.0
    %197 = vmatpush1.msra.mxu0 0.0
    %198 = vmatprep.subr.mxu0 0.0
    %199 = vmatpush1.msra.mxu0 0.0
    %200 = vmatprep.subr.mxu0 0.0
    %201 = vmatpush1.msra.mxu0 0.0
    %202 = vmatprep.subr.mxu0 0.0
    %203 = vmatpush1.msra.mxu0 0.0
    %204 = vmatprep.mubr.f32.mxu0 0.0
    %205 = vmatmul.mubr.f32.gmra.mrb[0].mxu0 %v101
    %v206 = vpop.f32.mrb[0].mxu0
    %v207 = vadd.f32 %v138, %v206
    %v208 = vpop.f32.mrb[0].mxu0
    %209 = vmatprep.mubr.f32.mxu0 0.0
    %210 = vmatmul.mubr.f32.gmra.mrb[0].mxu0 %v102
    %v211 = vpop.f32.mrb[0].mxu0
    %v212 = vadd.f32 %v138, %v211
    %v213 = vpop.f32.mrb[0].mxu0
    %214 = vmatprep.mubr.f32.mxu0 0.0
    %215 = vmatmul.mubr.f32.gmra.mrb[0].mxu0 %v103
    %v216 = vpop.f32.mrb[0].mxu0
    %v217 = vadd.f32 %v138, %v216
    %v218 = vpop.f32.mrb[0].mxu0
    %219 = vmatprep.mubr.f32.mxu0 0.0
    %220 = vmatmul.mubr.f32.gmra.mrb[0].mxu0 %v104
    %v221 = vpop.f32.mrb[0].mxu0
    %v222 = vadd.f32 %v138, %v221
    %v223 = vpop.f32.mrb[0].mxu0
    %224 = vmatprep.mubr.f32.mxu0 0.0
    %225 = vmatmul.mubr.f32.gmra.mrb[0].mxu0 %v105
    %v226 = vpop.f32.mrb[0].mxu0
    %v227 = vadd.f32 %v138, %v226
    %v228 = vpop.f32.mrb[0].mxu0
    %229 = vmatprep.mubr.f32.mxu0 0.0
    %230 = vmatmul.mubr.f32.gmra.mrb[0].mxu0 %v106
    %v231 = vpop.f32.mrb[0].mxu0
    %v232 = vadd.f32 %v138, %v231
    %v233 = vpop.f32.mrb[0].mxu0
    %234 = vmatprep.mubr.f32.mxu0 0.0
    %235 = vmatmul.mubr.f32.gmra.mrb[0].mxu0 %v107
    %v236 = vpop.f32.mrb[0].mxu0
    %v237 = vadd.f32 %v138, %v236
    %v238 = vpop.f32.mrb[0].mxu0
    %239 = vmatprep.mubr.f32.mxu0 0.0
    %240 = vmatmul.mubr.f32.gmra.mrb[0].mxu0 %v108
    %v241 = vpop.f32.mrb[0].mxu0
    %v242 = vadd.f32 %v138, %v241
    %v243 = vpop.f32.mrb[0].mxu0
    %244 = vmatprep.mubr.f32.mxu0 0.0
    %245 = vmatmul.mubr.f32.gmra.mrb[0].mxu0 %v109
    %v246 = vpop.f32.mrb[0].mxu0
    %v247 = vadd.f32 %v138, %v246
    %v248 = vpop.f32.mrb[0].mxu0
    %249 = vmatprep.mubr.f32.mxu0 0.0
    %250 = vmatmul.mubr.f32.gmra.mrb[0].mxu0 %v110
    %v251 = vpop.f32.mrb[0].mxu0
    %v252 = vadd.f32 %v138, %v251
    %v253 = vpop.f32.mrb[0].mxu0
    %254 = vmatprep.mubr.f32.mxu0 0.0
    %255 = vmatmul.mubr.f32.gmra.mrb[0].mxu0 %v111
    %v256 = vpop.f32.mrb[0].mxu0
    %v257 = vadd.f32 %v138, %v256
    %v258 = vpop.f32.mrb[0].mxu0
    %259 = vmatprep.mubr.f32.mxu0 0.0
    %260 = vmatmul.mubr.f32.gmra.mrb[0].mxu0 %v112
    %v261 = vpop.f32.mrb[0].mxu0
    %v262 = vadd.f32 %v138, %v261
    %v263 = vpop.f32.mrb[0].mxu0
    %264 = vmatprep.mubr.f32.mxu0 0.0
    %265 = vmatmul.mubr.f32.gmra.mrb[0].mxu0 %v113
    %v266 = vpop.f32.mrb[0].mxu0
    %v267 = vadd.f32 %v138, %v266
    %v268 = vpop.f32.mrb[0].mxu0
    %269 = vmatprep.mubr.f32.mxu0 0.0
    %270 = vmatmul.mubr.f32.gmra.mrb[0].mxu0 %v114
    %v271 = vpop.f32.mrb[0].mxu0
    %v272 = vadd.f32 %v138, %v271
    %v273 = vpop.f32.mrb[0].mxu0
    %274 = vmatprep.mubr.f32.mxu0 0.0
    %275 = vmatmul.mubr.f32.gmra.mrb[0].mxu0 %v115
    %v276 = vpop.f32.mrb[0].mxu0
    %v277 = vadd.f32 %v138, %v276
    %v278 = vpop.f32.mrb[0].mxu0
    %279 = vmatprep.mubr.f32.mxu0 0.0
    %280 = vmatmul.mubr.f32.gmra.mrb[0].mxu0 %v116
    %v281 = vpop.f32.mrb[0].mxu0
    %v282 = vadd.f32 %v138, %v281
    %v283 = vpop.f32.mrb[0].mxu0
    %284 = vdwg.mxu0
    %v285 = vsub.f32 0.0, %v207
    %v286 = vsub.f32 0.0, %v212
    %v287 = vsub.f32 0.0, %v217
    %v288 = vsub.f32 0.0, %v222
    %v289 = vsub.f32 0.0, %v227
    %v290 = vsub.f32 0.0, %v232
    %v291 = vsub.f32 0.0, %v237
    %v292 = vsub.f32 0.0, %v242
    %v293 = vsub.f32 0.0, %v247
    %v294 = vsub.f32 0.0, %v252
    %v295 = vsub.f32 0.0, %v257
    %v296 = vsub.f32 0.0, %v262
    %v297 = vsub.f32 0.0, %v267
    %v298 = vsub.f32 0.0, %v272
    %v299 = vsub.f32 0.0, %v277
    %v300 = vsub.f32 0.0, %v282
    %v301 = vmul.f32 %v285, 1.442695
    %v302 = vpow.pop %v301
    %v303 = vmul.f32 %v286, 1.442695
    %v304 = vpow.pop %v303
    %v305 = vmul.f32 %v287, 1.442695
    %v306 = vpow.pop %v305
    %v307 = vmul.f32 %v288, 1.442695
    %v308 = vpow.pop %v307
    %v309 = vmul.f32 %v289, 1.442695
    %v310 = vpow.pop %v309
    %v311 = vmul.f32 %v290, 1.442695
    %v312 = vpow.pop %v311
    %v313 = vmul.f32 %v291, 1.442695
    %v314 = vpow.pop %v313
    %v315 = vmul.f32 %v292, 1.442695
    %v316 = vpow.pop %v315
    %v317 = vmul.f32 %v293, 1.442695
    %v318 = vpow.pop %v317
    %v319 = vmul.f32 %v294, 1.442695
    %v320 = vpow.pop %v319
    %v321 = vmul.f32 %v295, 1.442695
    %v322 = vpow.pop %v321
    %v323 = vmul.f32 %v296, 1.442695
    %v324 = vpow.pop %v323
    %v325 = vmul.f32 %v297, 1.442695
    %v326 = vpow.pop %v325
    %v327 = vmul.f32 %v298, 1.442695
    %v328 = vpow.pop %v327
    %v329 = vmul.f32 %v299, 1.442695
    %v330 = vpow.pop %v329
    %v331 = vmul.f32 %v300, 1.442695
    %v332 = vpow.pop %v331
    %v333 = vadd.f32 %v302, 1.0
    %v334 = vadd.f32 %v304, 1.0
    %v335 = vadd.f32 %v306, 1.0
    %v336 = vadd.f32 %v308, 1.0
    %v337 = vadd.f32 %v310, 1.0
    %v338 = vadd.f32 %v312, 1.0
    %v339 = vadd.f32 %v314, 1.0
    %v340 = vadd.f32 %v316, 1.0
    %v341 = vadd.f32 %v318, 1.0
    %v342 = vadd.f32 %v320, 1.0
    %v343 = vadd.f32 %v322, 1.0
    %v344 = vadd.f32 %v324, 1.0
    %v345 = vadd.f32 %v326, 1.0
    %v346 = vadd.f32 %v328, 1.0
    %v347 = vadd.f32 %v330, 1.0
    %v348 = vadd.f32 %v332, 1.0
    %v349 = vrcp.pop %v333
    %v350 = vrcp.pop %v334
    %v351 = vrcp.pop %v335
    %v352 = vrcp.pop %v336
    %v353 = vrcp.pop %v337
    %v354 = vrcp.pop %v338
    %v355 = vrcp.pop %v339
    %v356 = vrcp.pop %v340
    %v357 = vrcp.pop %v341
    %v358 = vrcp.pop %v342
    %v359 = vrcp.pop %v343
    %v360 = vrcp.pop %v344
    %v361 = vrcp.pop %v345
    %v362 = vrcp.pop %v346
    %v363 = vrcp.pop %v347
    %v364 = vrcp.pop %v348
    %v365 = vmul.f32 %v207, %v349
    %v366 = vmul.f32 %v212, %v350
    %v367 = vmul.f32 %v217, %v351
    %v368 = vmul.f32 %v222, %v352
    %v369 = vmul.f32 %v227, %v353
    %v370 = vmul.f32 %v232, %v354
    %v371 = vmul.f32 %v237, %v355
    %v372 = vmul.f32 %v242, %v356
    %v373 = vmul.f32 %v247, %v357
    %v374 = vmul.f32 %v252, %v358
    %v375 = vmul.f32 %v257, %v359
    %v376 = vmul.f32 %v262, %v360
    %v377 = vmul.f32 %v267, %v361
    %v378 = vmul.f32 %v272, %v362
    %v379 = vmul.f32 %v277, %v363
    %v380 = vmul.f32 %v282, %v364
    %v381 = vld [vmem:[#allocation7] sm:$0xff]
    %v382 = vld [vmem:[#allocation7 + $0x8] sm:$0xff]
    %v383 = vld [vmem:[#allocation7 + $0x10] sm:$0xff]
    %v384 = vld [vmem:[#allocation7 + $0x18] sm:$0xff]
    %v385 = vld [vmem:[#allocation7 + $0x20] sm:$0xff]
    %v386 = vld [vmem:[#allocation7 + $0x28] sm:$0xff]
    %v387 = vld [vmem:[#allocation7 + $0x30] sm:$0xff]
    %v388 = vld [vmem:[#allocation7 + $0x38] sm:$0xff]
    %v389 = vld [vmem:[#allocation7 + $0x40] sm:$0xff]
    %v390 = vld [vmem:[#allocation7 + $0x48] sm:$0xff]
    %v391 = vld [vmem:[#allocation7 + $0x50] sm:$0xff]
    %v392 = vld [vmem:[#allocation7 + $0x58] sm:$0xff]
    %v393 = vld [vmem:[#allocation7 + $0x60] sm:$0xff]
    %v394 = vld [vmem:[#allocation7 + $0x68] sm:$0xff]
    %v395 = vld [vmem:[#allocation7 + $0x70] sm:$0xff]
    %v396 = vld [vmem:[#allocation7 + $0x78] sm:$0xff]
    %v397 = vld [vmem:[%s4] sm:$0x1]
    %v399 = vlaneseq
    %v400 = vshrl.u32 %v399, 7
    %v401 = vsub.s32 0, %v400
    %v402 = vrot.slane %v397, %v401
    %404 = vmatprep.subr.mxu0 0.0
    %405 = vmatpush1.msra.mxu0 %v381
    %406 = vmatprep.subr.mxu0 0.0
    %407 = vmatpush1.msra.mxu0 %v382
    %408 = vmatprep.subr.mxu0 0.0
    %409 = vmatpush1.msra.mxu0 %v383
    %410 = vmatprep.subr.mxu0 0.0
    %411 = vmatpush1.msra.mxu0 %v384
    %412 = vmatprep.subr.mxu0 0.0
    %413 = vmatpush1.msra.mxu0 %v385
    %414 = vmatprep.subr.mxu0 0.0
    %415 = vmatpush1.msra.mxu0 %v386
    %416 = vmatprep.subr.mxu0 0.0
    %417 = vmatpush1.msra.mxu0 %v387
    %418 = vmatprep.subr.mxu0 0.0
    %419 = vmatpush1.msra.mxu0 %v388
    %420 = vmatprep.subr.mxu0 0.0
    %421 = vmatpush1.msra.mxu0 %v389
    %422 = vmatprep.subr.mxu0 0.0
    %423 = vmatpush1.msra.mxu0 %v390
    %424 = vmatprep.subr.mxu0 0.0
    %425 = vmatpush1.msra.mxu0 %v391
    %426 = vmatprep.subr.mxu0 0.0
    %427 = vmatpush1.msra.mxu0 %v392
    %428 = vmatprep.subr.mxu0 0.0
    %429 = vmatpush1.msra.mxu0 %v393
    %430 = vmatprep.subr.mxu0 0.0
    %431 = vmatpush1.msra.mxu0 %v394
    %432 = vmatprep.subr.mxu0 0.0
    %433 = vmatpush1.msra.mxu0 %v395
    %434 = vmatprep.subr.mxu0 0.0
    %435 = vmatpush1.msra.mxu0 %v396
    %436 = vmatprep.subr.mxu0 0.0
    %437 = vmatpush1.msra.mxu0 0.0
    %438 = vmatprep.subr.mxu0 0.0
    %439 = vmatpush1.msra.mxu0 0.0
    %440 = vmatprep.subr.mxu0 0.0
    %441 = vmatpush1.msra.mxu0 0.0
    %442 = vmatprep.subr.mxu0 0.0
    %443 = vmatpush1.msra.mxu0 0.0
    %444 = vmatprep.subr.mxu0 0.0
    %445 = vmatpush1.msra.mxu0 0.0
    %446 = vmatprep.subr.mxu0 0.0
    %447 = vmatpush1.msra.mxu0 0.0
    %448 = vmatprep.subr.mxu0 0.0
    %449 = vmatpush1.msra.mxu0 0.0
    %450 = vmatprep.subr.mxu0 0.0
    %451 = vmatpush1.msra.mxu0 0.0
    %452 = vmatprep.subr.mxu0 0.0
    %453 = vmatpush1.msra.mxu0 0.0
    %454 = vmatprep.subr.mxu0 0.0
    %455 = vmatpush1.msra.mxu0 0.0
    %456 = vmatprep.subr.mxu0 0.0
    %457 = vmatpush1.msra.mxu0 0.0
    %458 = vmatprep.subr.mxu0 0.0
    %459 = vmatpush1.msra.mxu0 0.0
    %460 = vmatprep.subr.mxu0 0.0
    %461 = vmatpush1.msra.mxu0 0.0
    %462 = vmatprep.subr.mxu0 0.0
    %463 = vmatpush1.msra.mxu0 0.0
    %464 = vmatprep.subr.mxu0 0.0
    %465 = vmatpush1.msra.mxu0 0.0
    %466 = vmatprep.subr.mxu0 0.0
    %467 = vmatpush1.msra.mxu0 0.0
    %468 = vmatprep.mubr.f32.mxu0 0.0
    %469 = vmatmul.mubr.f32.gmra.mrb[0].mxu0 %v365
    %v470 = vpop.f32.mrb[0].mxu0
    %v471 = vadd.f32 %v402, %v470
    %v472 = vpop.f32.mrb[0].mxu0
    %473 = vmatprep.mubr.f32.mxu0 0.0
    %474 = vmatmul.mubr.f32.gmra.mrb[0].mxu0 %v366
    %v475 = vpop.f32.mrb[0].mxu0
    %v476 = vadd.f32 %v402, %v475
    %v477 = vpop.f32.mrb[0].mxu0
    %478 = vmatprep.mubr.f32.mxu0 0.0
    %479 = vmatmul.mubr.f32.gmra.mrb[0].mxu0 %v367
    %v480 = vpop.f32.mrb[0].mxu0
    %v481 = vadd.f32 %v402, %v480
    %v482 = vpop.f32.mrb[0].mxu0
    %483 = vmatprep.mubr.f32.mxu0 0.0
    %484 = vmatmul.mubr.f32.gmra.mrb[0].mxu0 %v368
    %v485 = vpop.f32.mrb[0].mxu0
    %v486 = vadd.f32 %v402, %v485
    %v487 = vpop.f32.mrb[0].mxu0
    %488 = vmatprep.mubr.f32.mxu0 0.0
    %489 = vmatmul.mubr.f32.gmra.mrb[0].mxu0 %v369
    %v490 = vpop.f32.mrb[0].mxu0
    %v491 = vadd.f32 %v402, %v490
    %v492 = vpop.f32.mrb[0].mxu0
    %493 = vmatprep.mubr.f32.mxu0 0.0
    %494 = vmatmul.mubr.f32.gmra.mrb[0].mxu0 %v370
    %v495 = vpop.f32.mrb[0].mxu0
    %v496 = vadd.f32 %v402, %v495
    %v497 = vpop.f32.mrb[0].mxu0
    %498 = vmatprep.mubr.f32.mxu0 0.0
    %499 = vmatmul.mubr.f32.gmra.mrb[0].mxu0 %v371
    %v500 = vpop.f32.mrb[0].mxu0
    %v501 = vadd.f32 %v402, %v500
    %v502 = vpop.f32.mrb[0].mxu0
    %503 = vmatprep.mubr.f32.mxu0 0.0
    %504 = vmatmul.mubr.f32.gmra.mrb[0].mxu0 %v372
    %v505 = vpop.f32.mrb[0].mxu0
    %v506 = vadd.f32 %v402, %v505
    %v507 = vpop.f32.mrb[0].mxu0
    %508 = vmatprep.mubr.f32.mxu0 0.0
    %509 = vmatmul.mubr.f32.gmra.mrb[0].mxu0 %v373
    %v510 = vpop.f32.mrb[0].mxu0
    %v511 = vadd.f32 %v402, %v510
    %v512 = vpop.f32.mrb[0].mxu0
    %513 = vmatprep.mubr.f32.mxu0 0.0
    %514 = vmatmul.mubr.f32.gmra.mrb[0].mxu0 %v374
    %v515 = vpop.f32.mrb[0].mxu0
    %v516 = vadd.f32 %v402, %v515
    %v517 = vpop.f32.mrb[0].mxu0
    %518 = vmatprep.mubr.f32.mxu0 0.0
    %519 = vmatmul.mubr.f32.gmra.mrb[0].mxu0 %v375
    %v520 = vpop.f32.mrb[0].mxu0
    %v521 = vadd.f32 %v402, %v520
    %v522 = vpop.f32.mrb[0].mxu0
    %523 = vmatprep.mubr.f32.mxu0 0.0
    %524 = vmatmul.mubr.f32.gmra.mrb[0].mxu0 %v376
    %v525 = vpop.f32.mrb[0].mxu0
    %v526 = vadd.f32 %v402, %v525
    %v527 = vpop.f32.mrb[0].mxu0
    %528 = vmatprep.mubr.f32.mxu0 0.0
    %529 = vmatmul.mubr.f32.gmra.mrb[0].mxu0 %v377
    %v530 = vpop.f32.mrb[0].mxu0
    %v531 = vadd.f32 %v402, %v530
    %v532 = vpop.f32.mrb[0].mxu0
    %533 = vmatprep.mubr.f32.mxu0 0.0
    %534 = vmatmul.mubr.f32.gmra.mrb[0].mxu0 %v378
    %v535 = vpop.f32.mrb[0].mxu0
    %v536 = vadd.f32 %v402, %v535
    %v537 = vpop.f32.mrb[0].mxu0
    %538 = vmatprep.mubr.f32.mxu0 0.0
    %539 = vmatmul.mubr.f32.gmra.mrb[0].mxu0 %v379
    %v540 = vpop.f32.mrb[0].mxu0
    %v541 = vadd.f32 %v402, %v540
    %v542 = vpop.f32.mrb[0].mxu0
    %543 = vmatprep.mubr.f32.mxu0 0.0
    %544 = vmatmul.mubr.f32.gmra.mrb[0].mxu0 %v380
    %v545 = vpop.f32.mrb[0].mxu0
    %v546 = vadd.f32 %v402, %v545
    %v547 = vpop.f32.mrb[0].mxu0
    %548 = vdwg.mxu0
    %v549 = vsub.f32 0.0, %v471
    %v550 = vsub.f32 0.0, %v476
    %v551 = vsub.f32 0.0, %v481
    %v552 = vsub.f32 0.0, %v486
    %v553 = vsub.f32 0.0, %v491
    %v554 = vsub.f32 0.0, %v496
    %v555 = vsub.f32 0.0, %v501
    %v556 = vsub.f32 0.0, %v506
    %v557 = vsub.f32 0.0, %v511
    %v558 = vsub.f32 0.0, %v516
    %v559 = vsub.f32 0.0, %v521
    %v560 = vsub.f32 0.0, %v526
    %v561 = vsub.f32 0.0, %v531
    %v562 = vsub.f32 0.0, %v536
    %v563 = vsub.f32 0.0, %v541
    %v564 = vsub.f32 0.0, %v546
    %v565 = vmul.f32 %v549, 1.442695
    %v566 = vpow.pop %v565
    %v567 = vmul.f32 %v550, 1.442695
    %v568 = vpow.pop %v567
    %v569 = vmul.f32 %v551, 1.442695
    %v570 = vpow.pop %v569
    %v571 = vmul.f32 %v552, 1.442695
    %v572 = vpow.pop %v571
    %v573 = vmul.f32 %v553, 1.442695
    %v574 = vpow.pop %v573
    %v575 = vmul.f32 %v554, 1.442695
    %v576 = vpow.pop %v575
    %v577 = vmul.f32 %v555, 1.442695
    %v578 = vpow.pop %v577
    %v579 = vmul.f32 %v556, 1.442695
    %v580 = vpow.pop %v579
    %v581 = vmul.f32 %v557, 1.442695
    %v582 = vpow.pop %v581
    %v583 = vmul.f32 %v558, 1.442695
    %v584 = vpow.pop %v583
    %v585 = vmul.f32 %v559, 1.442695
    %v586 = vpow.pop %v585
    %v587 = vmul.f32 %v560, 1.442695
    %v588 = vpow.pop %v587
    %v589 = vmul.f32 %v561, 1.442695
    %v590 = vpow.pop %v589
    %v591 = vmul.f32 %v562, 1.442695
    %v592 = vpow.pop %v591
    %v593 = vmul.f32 %v563, 1.442695
    %v594 = vpow.pop %v593
    %v595 = vmul.f32 %v564, 1.442695
    %v596 = vpow.pop %v595
    %v597 = vadd.f32 %v566, 1.0
    %v598 = vadd.f32 %v568, 1.0
    %v599 = vadd.f32 %v570, 1.0
    %v600 = vadd.f32 %v572, 1.0
    %v601 = vadd.f32 %v574, 1.0
    %v602 = vadd.f32 %v576, 1.0
    %v603 = vadd.f32 %v578, 1.0
    %v604 = vadd.f32 %v580, 1.0
    %v605 = vadd.f32 %v582, 1.0
    %v606 = vadd.f32 %v584, 1.0
    %v607 = vadd.f32 %v586, 1.0
    %v608 = vadd.f32 %v588, 1.0
    %v609 = vadd.f32 %v590, 1.0
    %v610 = vadd.f32 %v592, 1.0
    %v611 = vadd.f32 %v594, 1.0
    %v612 = vadd.f32 %v596, 1.0
    %v613 = vrcp.pop %v597
    %v614 = vrcp.pop %v598
    %v615 = vrcp.pop %v599
    %v616 = vrcp.pop %v600
    %v617 = vrcp.pop %v601
    %v618 = vrcp.pop %v602
    %v619 = vrcp.pop %v603
    %v620 = vrcp.pop %v604
    %v621 = vrcp.pop %v605
    %v622 = vrcp.pop %v606
    %v623 = vrcp.pop %v607
    %v624 = vrcp.pop %v608
    %v625 = vrcp.pop %v609
    %v626 = vrcp.pop %v610
    %v627 = vrcp.pop %v611
    %v628 = vrcp.pop %v612
    %v629 = vmul.f32 %v471, %v613
    %v630 = vmul.f32 %v476, %v614
    %v631 = vmul.f32 %v481, %v615
    %v632 = vmul.f32 %v486, %v616
    %v633 = vmul.f32 %v491, %v617
    %v634 = vmul.f32 %v496, %v618
    %v635 = vmul.f32 %v501, %v619
    %v636 = vmul.f32 %v506, %v620
    %v637 = vmul.f32 %v511, %v621
    %v638 = vmul.f32 %v516, %v622
    %v639 = vmul.f32 %v521, %v623
    %v640 = vmul.f32 %v526, %v624
    %v641 = vmul.f32 %v531, %v625
    %v642 = vmul.f32 %v536, %v626
    %v643 = vmul.f32 %v541, %v627
    %v644 = vmul.f32 %v546, %v628
    %v645 = vld [vmem:[#allocation8] sm:$0xff]
    %v646 = vld [vmem:[#allocation8 + $0x8] sm:$0xff]
    %v647 = vld [vmem:[#allocation8 + $0x10] sm:$0xff]
    %v648 = vld [vmem:[#allocation8 + $0x18] sm:$0xff]
    %v649 = vld [vmem:[#allocation8 + $0x20] sm:$0xff]
    %v650 = vld [vmem:[#allocation8 + $0x28] sm:$0xff]
    %v651 = vld [vmem:[#allocation8 + $0x30] sm:$0xff]
    %v652 = vld [vmem:[#allocation8 + $0x38] sm:$0xff]
    %v653 = vld [vmem:[#allocation8 + $0x40] sm:$0xff]
    %v654 = vld [vmem:[#allocation8 + $0x48] sm:$0xff]
    %v655 = vld [vmem:[#allocation8 + $0x50] sm:$0xff]
    %v656 = vld [vmem:[#allocation8 + $0x58] sm:$0xff]
    %v657 = vld [vmem:[#allocation8 + $0x60] sm:$0xff]
    %v658 = vld [vmem:[#allocation8 + $0x68] sm:$0xff]
    %v659 = vld [vmem:[#allocation8 + $0x70] sm:$0xff]
    %v660 = vld [vmem:[#allocation8 + $0x78] sm:$0xff]
    %v661 = vld [vmem:[%s6] sm:$0x1]
    %v663 = vlaneseq
    %v664 = vshrl.u32 %v663, 7
    %v665 = vsub.s32 0, %v664
    %v666 = vrot.slane %v661, %v665
    %668 = vmatprep.subr.mxu0 0.0
    %669 = vmatpush1.msra.mxu0 %v645
    %670 = vmatprep.subr.mxu0 0.0
    %671 = vmatpush1.msra.mxu0 %v646
    %672 = vmatprep.subr.mxu0 0.0
    %673 = vmatpush1.msra.mxu0 %v647
    %674 = vmatprep.subr.mxu0 0.0
    %675 = vmatpush1.msra.mxu0 %v648
    %676 = vmatprep.subr.mxu0 0.0
    %677 = vmatpush1.msra.mxu0 %v649
    %678 = vmatprep.subr.mxu0 0.0
    %679 = vmatpush1.msra.mxu0 %v650
    %680 = vmatprep.subr.mxu0 0.0
    %681 = vmatpush1.msra.mxu0 %v651
    %682 = vmatprep.subr.mxu0 0.0
    %683 = vmatpush1.msra.mxu0 %v652
    %684 = vmatprep.subr.mxu0 0.0
    %685 = vmatpush1.msra.mxu0 %v653
    %686 = vmatprep.subr.mxu0 0.0
    %687 = vmatpush1.msra.mxu0 %v654
    %688 = vmatprep.subr.mxu0 0.0
    %689 = vmatpush1.msra.mxu0 %v655
    %690 = vmatprep.subr.mxu0 0.0
    %691 = vmatpush1.msra.mxu0 %v656
    %692 = vmatprep.subr.mxu0 0.0
    %693 = vmatpush1.msra.mxu0 %v657
    %694 = vmatprep.subr.mxu0 0.0
    %695 = vmatpush1.msra.mxu0 %v658
    %696 = vmatprep.subr.mxu0 0.0
    %697 = vmatpush1.msra.mxu0 %v659
    %698 = vmatprep.subr.mxu0 0.0
    %699 = vmatpush1.msra.mxu0 %v660
    %700 = vmatprep.subr.mxu0 0.0
    %701 = vmatpush1.msra.mxu0 0.0
    %702 = vmatprep.subr.mxu0 0.0
    %703 = vmatpush1.msra.mxu0 0.0
    %704 = vmatprep.subr.mxu0 0.0
    %705 = vmatpush1.msra.mxu0 0.0
    %706 = vmatprep.subr.mxu0 0.0
    %707 = vmatpush1.msra.mxu0 0.0
    %708 = vmatprep.subr.mxu0 0.0
    %709 = vmatpush1.msra.mxu0 0.0
    %710 = vmatprep.subr.mxu0 0.0
    %711 = vmatpush1.msra.mxu0 0.0
    %712 = vmatprep.subr.mxu0 0.0
    %713 = vmatpush1.msra.mxu0 0.0
    %714 = vmatprep.subr.mxu0 0.0
    %715 = vmatpush1.msra.mxu0 0.0
    %716 = vmatprep.subr.mxu0 0.0
    %717 = vmatpush1.msra.mxu0 0.0
    %718 = vmatprep.subr.mxu0 0.0
    %719 = vmatpush1.msra.mxu0 0.0
    %720 = vmatprep.subr.mxu0 0.0
    %721 = vmatpush1.msra.mxu0 0.0
    %722 = vmatprep.subr.mxu0 0.0
    %723 = vmatpush1.msra.mxu0 0.0
    %724 = vmatprep.subr.mxu0 0.0
    %725 = vmatpush1.msra.mxu0 0.0
    %726 = vmatprep.subr.mxu0 0.0
    %727 = vmatpush1.msra.mxu0 0.0
    %728 = vmatprep.subr.mxu0 0.0
    %729 = vmatpush1.msra.mxu0 0.0
    %730 = vmatprep.subr.mxu0 0.0
    %731 = vmatpush1.msra.mxu0 0.0
    %732 = vmatprep.mubr.f32.mxu0 0.0
    %733 = vmatmul.mubr.f32.gmra.mrb[0].mxu0 %v629
    %v734 = vpop.f32.mrb[0].mxu0
    %v735 = vadd.f32 %v666, %v734
    %v736 = vpop.f32.mrb[0].mxu0
    %737 = vmatprep.mubr.f32.mxu0 0.0
    %738 = vmatmul.mubr.f32.gmra.mrb[0].mxu0 %v630
    %v739 = vpop.f32.mrb[0].mxu0
    %v740 = vadd.f32 %v666, %v739
    %v741 = vpop.f32.mrb[0].mxu0
    %742 = vmatprep.mubr.f32.mxu0 0.0
    %743 = vmatmul.mubr.f32.gmra.mrb[0].mxu0 %v631
    %v744 = vpop.f32.mrb[0].mxu0
    %v745 = vadd.f32 %v666, %v744
    %v746 = vpop.f32.mrb[0].mxu0
    %747 = vmatprep.mubr.f32.mxu0 0.0
    %748 = vmatmul.mubr.f32.gmra.mrb[0].mxu0 %v632
    %v749 = vpop.f32.mrb[0].mxu0
    %v750 = vadd.f32 %v666, %v749
    %v751 = vpop.f32.mrb[0].mxu0
    %752 = vmatprep.mubr.f32.mxu0 0.0
    %753 = vmatmul.mubr.f32.gmra.mrb[0].mxu0 %v633
    %v754 = vpop.f32.mrb[0].mxu0
    %v755 = vadd.f32 %v666, %v754
    %v756 = vpop.f32.mrb[0].mxu0
    %757 = vmatprep.mubr.f32.mxu0 0.0
    %758 = vmatmul.mubr.f32.gmra.mrb[0].mxu0 %v634
    %v759 = vpop.f32.mrb[0].mxu0
    %v760 = vadd.f32 %v666, %v759
    %v761 = vpop.f32.mrb[0].mxu0
    %762 = vmatprep.mubr.f32.mxu0 0.0
    %763 = vmatmul.mubr.f32.gmra.mrb[0].mxu0 %v635
    %v764 = vpop.f32.mrb[0].mxu0
    %v765 = vadd.f32 %v666, %v764
    %v766 = vpop.f32.mrb[0].mxu0
    %767 = vmatprep.mubr.f32.mxu0 0.0
    %768 = vmatmul.mubr.f32.gmra.mrb[0].mxu0 %v636
    %v769 = vpop.f32.mrb[0].mxu0
    %v770 = vadd.f32 %v666, %v769
    %v771 = vpop.f32.mrb[0].mxu0
    %772 = vmatprep.mubr.f32.mxu0 0.0
    %773 = vmatmul.mubr.f32.gmra.mrb[0].mxu0 %v637
    %v774 = vpop.f32.mrb[0].mxu0
    %v775 = vadd.f32 %v666, %v774
    %v776 = vpop.f32.mrb[0].mxu0
    %777 = vmatprep.mubr.f32.mxu0 0.0
    %778 = vmatmul.mubr.f32.gmra.mrb[0].mxu0 %v638
    %v779 = vpop.f32.mrb[0].mxu0
    %v780 = vadd.f32 %v666, %v779
    %v781 = vpop.f32.mrb[0].mxu0
    %782 = vmatprep.mubr.f32.mxu0 0.0
    %783 = vmatmul.mubr.f32.gmra.mrb[0].mxu0 %v639
    %v784 = vpop.f32.mrb[0].mxu0
    %v785 = vadd.f32 %v666, %v784
    %v786 = vpop.f32.mrb[0].mxu0
    %787 = vmatprep.mubr.f32.mxu0 0.0
    %788 = vmatmul.mubr.f32.gmra.mrb[0].mxu0 %v640
    %v789 = vpop.f32.mrb[0].mxu0
    %v790 = vadd.f32 %v666, %v789
    %v791 = vpop.f32.mrb[0].mxu0
    %792 = vmatprep.mubr.f32.mxu0 0.0
    %793 = vmatmul.mubr.f32.gmra.mrb[0].mxu0 %v641
    %v794 = vpop.f32.mrb[0].mxu0
    %v795 = vadd.f32 %v666, %v794
    %v796 = vpop.f32.mrb[0].mxu0
    %797 = vmatprep.mubr.f32.mxu0 0.0
    %798 = vmatmul.mubr.f32.gmra.mrb[0].mxu0 %v642
    %v799 = vpop.f32.mrb[0].mxu0
    %v800 = vadd.f32 %v666, %v799
    %v801 = vpop.f32.mrb[0].mxu0
    %802 = vmatprep.mubr.f32.mxu0 0.0
    %803 = vmatmul.mubr.f32.gmra.mrb[0].mxu0 %v643
    %v804 = vpop.f32.mrb[0].mxu0
    %v805 = vadd.f32 %v666, %v804
    %v806 = vpop.f32.mrb[0].mxu0
    %807 = vmatprep.mubr.f32.mxu0 0.0
    %808 = vmatmul.mubr.f32.gmra.mrb[0].mxu0 %v644
    %v809 = vpop.f32.mrb[0].mxu0
    %v810 = vadd.f32 %v666, %v809
    %v811 = vpop.f32.mrb[0].mxu0
    %812 = vdwg.mxu0
    %v813 = vsub.f32 0.0, %v735
    %v814 = vsub.f32 0.0, %v740
    %v815 = vsub.f32 0.0, %v745
    %v816 = vsub.f32 0.0, %v750
    %v817 = vsub.f32 0.0, %v755
    %v818 = vsub.f32 0.0, %v760
    %v819 = vsub.f32 0.0, %v765
    %v820 = vsub.f32 0.0, %v770
    %v821 = vsub.f32 0.0, %v775
    %v822 = vsub.f32 0.0, %v780
    %v823 = vsub.f32 0.0, %v785
    %v824 = vsub.f32 0.0, %v790
    %v825 = vsub.f32 0.0, %v795
    %v826 = vsub.f32 0.0, %v800
    %v827 = vsub.f32 0.0, %v805
    %v828 = vsub.f32 0.0, %v810
    %v829 = vmul.f32 %v813, 1.442695
    %v830 = vpow.pop %v829
    %v831 = vmul.f32 %v814, 1.442695
    %v832 = vpow.pop %v831
    %v833 = vmul.f32 %v815, 1.442695
    %v834 = vpow.pop %v833
    %v835 = vmul.f32 %v816, 1.442695
    %v836 = vpow.pop %v835
    %v837 = vmul.f32 %v817, 1.442695
    %v838 = vpow.pop %v837
    %v839 = vmul.f32 %v818, 1.442695
    %v840 = vpow.pop %v839
    %v841 = vmul.f32 %v819, 1.442695
    %v842 = vpow.pop %v841
    %v843 = vmul.f32 %v820, 1.442695
    %v844 = vpow.pop %v843
    %v845 = vmul.f32 %v821, 1.442695
    %v846 = vpow.pop %v845
    %v847 = vmul.f32 %v822, 1.442695
    %v848 = vpow.pop %v847
    %v849 = vmul.f32 %v823, 1.442695
    %v850 = vpow.pop %v849
    %v851 = vmul.f32 %v824, 1.442695
    %v852 = vpow.pop %v851
    %v853 = vmul.f32 %v825, 1.442695
    %v854 = vpow.pop %v853
    %v855 = vmul.f32 %v826, 1.442695
    %v856 = vpow.pop %v855
    %v857 = vmul.f32 %v827, 1.442695
    %v858 = vpow.pop %v857
    %v859 = vmul.f32 %v828, 1.442695
    %v860 = vpow.pop %v859
    %v861 = vadd.f32 %v830, 1.0
    %v862 = vadd.f32 %v832, 1.0
    %v863 = vadd.f32 %v834, 1.0
    %v864 = vadd.f32 %v836, 1.0
    %v865 = vadd.f32 %v838, 1.0
    %v866 = vadd.f32 %v840, 1.0
    %v867 = vadd.f32 %v842, 1.0
    %v868 = vadd.f32 %v844, 1.0
    %v869 = vadd.f32 %v846, 1.0
    %v870 = vadd.f32 %v848, 1.0
    %v871 = vadd.f32 %v850, 1.0
    %v872 = vadd.f32 %v852, 1.0
    %v873 = vadd.f32 %v854, 1.0
    %v874 = vadd.f32 %v856, 1.0
    %v875 = vadd.f32 %v858, 1.0
    %v876 = vadd.f32 %v860, 1.0
    %v877 = vrcp.pop %v861
    %v878 = vrcp.pop %v862
    %v879 = vrcp.pop %v863
    %v880 = vrcp.pop %v864
    %v881 = vrcp.pop %v865
    %v882 = vrcp.pop %v866
    %v883 = vrcp.pop %v867
    %v884 = vrcp.pop %v868
    %v885 = vrcp.pop %v869
    %v886 = vrcp.pop %v870
    %v887 = vrcp.pop %v871
    %v888 = vrcp.pop %v872
    %v889 = vrcp.pop %v873
    %v890 = vrcp.pop %v874
    %v891 = vrcp.pop %v875
    %v892 = vrcp.pop %v876
    %v893 = vmul.f32 %v735, %v877
    %v894 = vmul.f32 %v740, %v878
    %v895 = vmul.f32 %v745, %v879
    %v896 = vmul.f32 %v750, %v880
    %v897 = vmul.f32 %v755, %v881
    %v898 = vmul.f32 %v760, %v882
    %v899 = vmul.f32 %v765, %v883
    %v900 = vmul.f32 %v770, %v884
    %v901 = vmul.f32 %v775, %v885
    %v902 = vmul.f32 %v780, %v886
    %v903 = vmul.f32 %v785, %v887
    %v904 = vmul.f32 %v790, %v888
    %v905 = vmul.f32 %v795, %v889
    %v906 = vmul.f32 %v800, %v890
    %v907 = vmul.f32 %v805, %v891
    %v908 = vmul.f32 %v810, %v892
    %v909 = vld [vmem:[#allocation10] sm:$0xff]
    %v910 = vld [vmem:[#allocation10 + $0x8] sm:$0xff]
    %v911 = vld [vmem:[#allocation10 + $0x10] sm:$0xff]
    %v912 = vld [vmem:[#allocation10 + $0x18] sm:$0xff]
    %v913 = vld [vmem:[#allocation10 + $0x20] sm:$0xff]
    %v914 = vld [vmem:[#allocation10 + $0x28] sm:$0xff]
    %v915 = vld [vmem:[#allocation10 + $0x30] sm:$0xff]
    %v916 = vld [vmem:[#allocation10 + $0x38] sm:$0xff]
    %v917 = vld [vmem:[#allocation10 + $0x40] sm:$0xff]
    %v918 = vld [vmem:[#allocation10 + $0x48] sm:$0xff]
    %v919 = vld [vmem:[#allocation10 + $0x50] sm:$0xff]
    %v920 = vld [vmem:[#allocation10 + $0x58] sm:$0xff]
    %v921 = vld [vmem:[#allocation10 + $0x60] sm:$0xff]
    %v922 = vld [vmem:[#allocation10 + $0x68] sm:$0xff]
    %v923 = vld [vmem:[#allocation10 + $0x70] sm:$0xff]
    %v924 = vld [vmem:[#allocation10 + $0x78] sm:$0xff]
    %v925 = vld [vmem:[%s8] sm:$0x1]
    %v927 = vlaneseq
    %v928 = vshrl.u32 %v927, 7
    %v929 = vsub.s32 0, %v928
    %v930 = vrot.slane %v925, %v929
    %932 = vmatprep.subr.mxu0 0.0
    %933 = vmatpush1.msra.mxu0 %v909
    %934 = vmatprep.subr.mxu0 0.0
    %935 = vmatpush1.msra.mxu0 %v910
    %936 = vmatprep.subr.mxu0 0.0
    %937 = vmatpush1.msra.mxu0 %v911
    %938 = vmatprep.subr.mxu0 0.0
    %939 = vmatpush1.msra.mxu0 %v912
    %940 = vmatprep.subr.mxu0 0.0
    %941 = vmatpush1.msra.mxu0 %v913
    %942 = vmatprep.subr.mxu0 0.0
    %943 = vmatpush1.msra.mxu0 %v914
    %944 = vmatprep.subr.mxu0 0.0
    %945 = vmatpush1.msra.mxu0 %v915
    %946 = vmatprep.subr.mxu0 0.0
    %947 = vmatpush1.msra.mxu0 %v916
    %948 = vmatprep.subr.mxu0 0.0
    %949 = vmatpush1.msra.mxu0 %v917
    %950 = vmatprep.subr.mxu0 0.0
    %951 = vmatpush1.msra.mxu0 %v918
    %952 = vmatprep.subr.mxu0 0.0
    %953 = vmatpush1.msra.mxu0 %v919
    %954 = vmatprep.subr.mxu0 0.0
    %955 = vmatpush1.msra.mxu0 %v920
    %956 = vmatprep.subr.mxu0 0.0
    %957 = vmatpush1.msra.mxu0 %v921
    %958 = vmatprep.subr.mxu0 0.0
    %959 = vmatpush1.msra.mxu0 %v922
    %960 = vmatprep.subr.mxu0 0.0
    %961 = vmatpush1.msra.mxu0 %v923
    %962 = vmatprep.subr.mxu0 0.0
    %963 = vmatpush1.msra.mxu0 %v924
    %964 = vmatprep.subr.mxu0 0.0
    %965 = vmatpush1.msra.mxu0 0.0
    %966 = vmatprep.subr.mxu0 0.0
    %967 = vmatpush1.msra.mxu0 0.0
    %968 = vmatprep.subr.mxu0 0.0
    %969 = vmatpush1.msra.mxu0 0.0
    %970 = vmatprep.subr.mxu0 0.0
    %971 = vmatpush1.msra.mxu0 0.0
    %972 = vmatprep.subr.mxu0 0.0
    %973 = vmatpush1.msra.mxu0 0.0
    %974 = vmatprep.subr.mxu0 0.0
    %975 = vmatpush1.msra.mxu0 0.0
    %976 = vmatprep.subr.mxu0 0.0
    %977 = vmatpush1.msra.mxu0 0.0
    %978 = vmatprep.subr.mxu0 0.0
    %979 = vmatpush1.msra.mxu0 0.0
    %980 = vmatprep.subr.mxu0 0.0
    %981 = vmatpush1.msra.mxu0 0.0
    %982 = vmatprep.subr.mxu0 0.0
    %983 = vmatpush1.msra.mxu0 0.0
    %984 = vmatprep.subr.mxu0 0.0
    %985 = vmatpush1.msra.mxu0 0.0
    %986 = vmatprep.subr.mxu0 0.0
    %987 = vmatpush1.msra.mxu0 0.0
    %988 = vmatprep.subr.mxu0 0.0
    %989 = vmatpush1.msra.mxu0 0.0
    %990 = vmatprep.subr.mxu0 0.0
    %991 = vmatpush1.msra.mxu0 0.0
    %992 = vmatprep.subr.mxu0 0.0
    %993 = vmatpush1.msra.mxu0 0.0
    %994 = vmatprep.subr.mxu0 0.0
    %995 = vmatpush1.msra.mxu0 0.0
    %996 = vmatprep.mubr.f32.mxu0 0.0
    %997 = vmatmul.mubr.f32.gmra.mrb[0].mxu0 %v893
    %v998 = vpop.f32.mrb[0].mxu0
    %v999 = vadd.f32 %v930, %v998
    %v1000 = vpop.f32.mrb[0].mxu0
    %1001 = vmatprep.mubr.f32.mxu0 0.0
    %1002 = vmatmul.mubr.f32.gmra.mrb[0].mxu0 %v894
    %v1003 = vpop.f32.mrb[0].mxu0
    %v1004 = vadd.f32 %v930, %v1003
    %v1005 = vpop.f32.mrb[0].mxu0
    %1006 = vmatprep.mubr.f32.mxu0 0.0
    %1007 = vmatmul.mubr.f32.gmra.mrb[0].mxu0 %v895
    %v1008 = vpop.f32.mrb[0].mxu0
    %v1009 = vadd.f32 %v930, %v1008
    %v1010 = vpop.f32.mrb[0].mxu0
    %1011 = vmatprep.mubr.f32.mxu0 0.0
    %1012 = vmatmul.mubr.f32.gmra.mrb[0].mxu0 %v896
    %v1013 = vpop.f32.mrb[0].mxu0
    %v1014 = vadd.f32 %v930, %v1013
    %v1015 = vpop.f32.mrb[0].mxu0
    %1016 = vmatprep.mubr.f32.mxu0 0.0
    %1017 = vmatmul.mubr.f32.gmra.mrb[0].mxu0 %v897
    %v1018 = vpop.f32.mrb[0].mxu0
    %v1019 = vadd.f32 %v930, %v1018
    %v1020 = vpop.f32.mrb[0].mxu0
    %1021 = vmatprep.mubr.f32.mxu0 0.0
    %1022 = vmatmul.mubr.f32.gmra.mrb[0].mxu0 %v898
    %v1023 = vpop.f32.mrb[0].mxu0
    %v1024 = vadd.f32 %v930, %v1023
    %v1025 = vpop.f32.mrb[0].mxu0
    %1026 = vmatprep.mubr.f32.mxu0 0.0
    %1027 = vmatmul.mubr.f32.gmra.mrb[0].mxu0 %v899
    %v1028 = vpop.f32.mrb[0].mxu0
    %v1029 = vadd.f32 %v930, %v1028
    %v1030 = vpop.f32.mrb[0].mxu0
    %1031 = vmatprep.mubr.f32.mxu0 0.0
    %1032 = vmatmul.mubr.f32.gmra.mrb[0].mxu0 %v900
    %v1033 = vpop.f32.mrb[0].mxu0
    %v1034 = vadd.f32 %v930, %v1033
    %v1035 = vpop.f32.mrb[0].mxu0
    %1036 = vmatprep.mubr.f32.mxu0 0.0
    %1037 = vmatmul.mubr.f32.gmra.mrb[0].mxu0 %v901
    %v1038 = vpop.f32.mrb[0].mxu0
    %v1039 = vadd.f32 %v930, %v1038
    %v1040 = vpop.f32.mrb[0].mxu0
    %1041 = vmatprep.mubr.f32.mxu0 0.0
    %1042 = vmatmul.mubr.f32.gmra.mrb[0].mxu0 %v902
    %v1043 = vpop.f32.mrb[0].mxu0
    %v1044 = vadd.f32 %v930, %v1043
    %v1045 = vpop.f32.mrb[0].mxu0
    %1046 = vmatprep.mubr.f32.mxu0 0.0
    %1047 = vmatmul.mubr.f32.gmra.mrb[0].mxu0 %v903
    %v1048 = vpop.f32.mrb[0].mxu0
    %v1049 = vadd.f32 %v930, %v1048
    %v1050 = vpop.f32.mrb[0].mxu0
    %1051 = vmatprep.mubr.f32.mxu0 0.0
    %1052 = vmatmul.mubr.f32.gmra.mrb[0].mxu0 %v904
    %v1053 = vpop.f32.mrb[0].mxu0
    %v1054 = vadd.f32 %v930, %v1053
    %v1055 = vpop.f32.mrb[0].mxu0
    %1056 = vmatprep.mubr.f32.mxu0 0.0
    %1057 = vmatmul.mubr.f32.gmra.mrb[0].mxu0 %v905
    %v1058 = vpop.f32.mrb[0].mxu0
    %v1059 = vadd.f32 %v930, %v1058
    %v1060 = vpop.f32.mrb[0].mxu0
    %1061 = vmatprep.mubr.f32.mxu0 0.0
    %1062 = vmatmul.mubr.f32.gmra.mrb[0].mxu0 %v906
    %v1063 = vpop.f32.mrb[0].mxu0
    %v1064 = vadd.f32 %v930, %v1063
    %v1065 = vpop.f32.mrb[0].mxu0
    %1066 = vmatprep.mubr.f32.mxu0 0.0
    %1067 = vmatmul.mubr.f32.gmra.mrb[0].mxu0 %v907
    %v1068 = vpop.f32.mrb[0].mxu0
    %v1069 = vadd.f32 %v930, %v1068
    %v1070 = vpop.f32.mrb[0].mxu0
    %1071 = vmatprep.mubr.f32.mxu0 0.0
    %1072 = vmatmul.mubr.f32.gmra.mrb[0].mxu0 %v908
    %v1073 = vpop.f32.mrb[0].mxu0
    %v1074 = vadd.f32 %v930, %v1073
    %v1075 = vpop.f32.mrb[0].mxu0
    %1076 = vdwg.mxu0
    %1077 = vst [vmem:[#allocation11] sm:$0xff] %v999
    %1078 = vst [vmem:[#allocation11 + $0x8] sm:$0xff] %v1004
    %1079 = vst [vmem:[#allocation11 + $0x10] sm:$0xff] %v1009
    %1080 = vst [vmem:[#allocation11 + $0x18] sm:$0xff] %v1014
    %1081 = vst [vmem:[#allocation11 + $0x20] sm:$0xff] %v1019
    %1082 = vst [vmem:[#allocation11 + $0x28] sm:$0xff] %v1024
    %1083 = vst [vmem:[#allocation11 + $0x30] sm:$0xff] %v1029
    %1084 = vst [vmem:[#allocation11 + $0x38] sm:$0xff] %v1034
    %1085 = vst [vmem:[#allocation11 + $0x40] sm:$0xff] %v1039
    %1086 = vst [vmem:[#allocation11 + $0x48] sm:$0xff] %v1044
    %1087 = vst [vmem:[#allocation11 + $0x50] sm:$0xff] %v1049
    %1088 = vst [vmem:[#allocation11 + $0x58] sm:$0xff] %v1054
    %1089 = vst [vmem:[#allocation11 + $0x60] sm:$0xff] %v1059
    %1090 = vst [vmem:[#allocation11 + $0x68] sm:$0xff] %v1064
    %1091 = vst [vmem:[#allocation11 + $0x70] sm:$0xff] %v1069
    %1092 = vst [vmem:[#allocation11 + $0x78] sm:$0xff] %v1074
    // Predicated region
    $region58: #{tpu_custom_call.1} parent=1 // pred_check
      _
    $region59: #{tpu_custom_call.1} parent=1 // pred_check_branch
      %1094 = sbr.rel (0) target = $region61
    $region60: #{tpu_custom_call.1} parent=1 // pred_region
      %s1096 = ssub.s32 2048, 2048
      %1097 = vsyncadd [#allocation4], %s1096
      %s1098 = sshll.u32 [#allocation11], 4
      %s1099 = int_to_ptr.vmem [resolvable:$true] %s1098
      %1104 = dma.vmem_to_hbm [thread:$0]  %s1099, 2048, %s9, [#allocation4], 128, 128, 8
    $region61: #{tpu_custom_call.1} parent=1 // pred_fallthru
      _
    // Predicated region
    $region62: #{tpu_custom_call.1} parent=1 // pred_check
      _
    $region63: #{tpu_custom_call.1} parent=1 // pred_check_branch
      %1106 = sbr.rel (0) target = $region65
    $region64: #{tpu_custom_call.1} parent=1 // pred_region
      %1107 = dma.done [#allocation4], 2048
    $region65: #{tpu_custom_call.1} parent=1 // pred_fallthru
      _
    %1108 = vsyncpa [#allocation3], 1
    %1109 = vsyncpa [#allocation6], 1
    %1110 = vsyncpa [#allocation9], 1
    %1111 = vsyncpa [#allocation4], 1

</llo_original>
